<compile_context>
chip_gen: v7x
topology: tpu7x:2x2x1
jax: 0.10.0
libtpu: 0.0.40
codegen_flags: <defaults>
</compile_context>

<pallas_src>
import jax
import jax.numpy as jnp
from jax.experimental import pallas as pl
from jax.experimental.pallas import tpu as pltpu


def _round_up(x, m):
    return (x + m - 1) // m * m


def _vmem_capacity_bytes():
    try:
        return int(pltpu.get_tpu_info().vmem_capacity_bytes)
    except Exception:
        pass
    try:
        kind = jax.devices()[0].device_kind.lower()
        if "v7" in kind:
            return 64 * 1024 * 1024
    except Exception:
        pass
    return 128 * 1024 * 1024


def _make_ffn_kernel(num_k):
    """num_k is the static number of d_ff reduction steps (grid axis 1)."""

    if num_k == 1:
        # Whole d_ff in one step: no accumulator scratch, write o_ref directly.
        def kernel(x_ref, w1_ref, b1_ref, w2_ref, b2_ref, o_ref):
            x = x_ref[...]
            if x.dtype != w1_ref.dtype:          # no-op on the production path
                x = x.astype(w1_ref.dtype)
            h = jnp.dot(x, w1_ref[...], preferred_element_type=jnp.float32)
            h = jnp.maximum(h + b1_ref[...].astype(jnp.float32), 0.0)
            # dropout == identity (eval mode)
            y = jnp.dot(h.astype(w2_ref.dtype), w2_ref[...],
                        preferred_element_type=jnp.float32)
            o_ref[...] = (y + b2_ref[...].astype(jnp.float32)).astype(o_ref.dtype)

        return kernel

    def kernel(x_ref, w1_ref, b1_ref, w2_ref, b2_ref, o_ref, acc_ref):
        k = pl.program_id(1)

        x = x_ref[...]
        if x.dtype != w1_ref.dtype:              # no-op on the production path
            x = x.astype(w1_ref.dtype)
        h = jnp.dot(x, w1_ref[...], preferred_element_type=jnp.float32)
        h = jnp.maximum(h + b1_ref[...].astype(jnp.float32), 0.0)
        # dropout == identity (eval mode)
        contrib = jnp.dot(h.astype(w2_ref.dtype), w2_ref[...],
                          preferred_element_type=jnp.float32)

        @pl.when(k == 0)
        def _():
            # Fold b2 into the first write: no zeros-init store, no extra add.
            acc_ref[...] = contrib + b2_ref[...].astype(jnp.float32)

        @pl.when(k > 0)
        def _():
            acc_ref[...] += contrib

        @pl.when(k == num_k - 1)
        def _():
            o_ref[...] = acc_ref[...].astype(o_ref.dtype)

    return kernel


def feedforward(x, w1, b1, w2, b2, *, tile_m=None, tile_ff=None,
                compute_dtype=None):
    """x: (..., d_model). w1: (d_model, d_ff), w2: (d_ff, d_model).

    Returns (..., d_model) in x.dtype.  Matmuls run in `compute_dtype`
    (default: w1.dtype, e.g. bf16) with f32 accumulation.
    NOTE: for a real model, pre-pad/pre-cast the weights once at init instead
    of per call (here the pads are skipped when shapes are already aligned).
    """
    d_model = x.shape[-1]
    d_ff = w1.shape[-1]
    lead = x.shape[:-1]
    out_dtype = x.dtype
    compute_dtype = jnp.dtype(compute_dtype or w1.dtype)

    xm = x.reshape(-1, d_model)
    M = xm.shape[0]
    b1 = b1.reshape(1, d_ff)
    b2 = b2.reshape(1, d_model)

    d_model_p = _round_up(d_model, 128)
    d_ff_128 = _round_up(d_ff, 128)

    cb = jnp.dtype(compute_dtype).itemsize
    ob = jnp.dtype(out_dtype).itemsize
    gran = 8 if ob >= 4 else 16            # sublane tile for the output dtype

    capacity = _vmem_capacity_bytes()
    vmem_limit = min(int(capacity * 0.85), capacity - 4 * 1024 * 1024)
    budget = vmem_limit - 2 * 1024 * 1024

    def fits(tm, tff):
        w_bytes = 2 * 2 * tff * d_model_p * cb             # W1+W2, double-buffered
        row_bytes = tm * d_model_p * (4 + 2 * cb + 2 * ob)  # acc + x + out tiles
        bias_bytes = 2 * (tff + d_model_p) * cb
        return w_bytes + row_bytes + bias_bytes <= budget

    # --- row tile ---
    if tile_m is None:
        target = 1024 if capacity >= 96 * 1024 * 1024 else 512
        tm = min(target, _round_up(M, gran))
        # keep >=2 row tiles when M allows so both v7x TensorCores get work
        if M >= 2 * gran and _round_up(M, tm) // tm < 2:
            tm = _round_up((M + 1) // 2, gran)
    else:
        tm = _round_up(min(tile_m, _round_up(M, gran)), gran)

    # --- d_ff tile (divisor of d_ff padded to 128 -> no dead MXU columns) ---
    if tile_ff is None:
        ff_cands = [c for c in range(d_ff_128, 0, -128) if d_ff_128 % c == 0]
        tff = None
        while tff is None:
            for c in ff_cands:
                if fits(tm, c):
                    tff = c
                    break
            if tff is None:
                if tm <= gran:
                    tff = 128            # last resort
                    break
                tm = max(gran, (tm // 2) // gran * gran)
        d_ff_p = d_ff_128
    else:
        tff = _round_up(min(tile_ff, d_ff_128), 128)
        d_ff_p = _round_up(d_ff_128, tff)

    M_p = _round_up(M, tm)
    grid = (M_p // tm, d_ff_p // tff)
    num_k = grid[1]

    # --- cast once, pad only when needed ---
    if xm.dtype != compute_dtype:
        xm = xm.astype(compute_dtype)
    if w1.dtype != compute_dtype:
        w1 = w1.astype(compute_dtype)
    if w2.dtype != compute_dtype:
        w2 = w2.astype(compute_dtype)

    if M_p != M or d_model_p != d_model:
        xm = jnp.pad(xm, ((0, M_p - M), (0, d_model_p - d_model)))
    if d_model_p != d_model or d_ff_p != d_ff:
        w1 = jnp.pad(w1, ((0, d_model_p - d_model), (0, d_ff_p - d_ff)))
        w2 = jnp.pad(w2, ((0, d_ff_p - d_ff), (0, d_model_p - d_model)))
    if d_ff_p != d_ff:
        b1 = jnp.pad(b1, ((0, 0), (0, d_ff_p - d_ff)))
    if d_model_p != d_model:
        b2 = jnp.pad(b2, ((0, 0), (0, d_model_p - d_model)))

    scratch = [] if num_k == 1 else [pltpu.VMEM((tm, d_model_p), jnp.float32)]

    out = pl.pallas_call(
        _make_ffn_kernel(num_k),
        out_shape=jax.ShapeDtypeStruct((M_p, d_model_p), out_dtype),
        grid_spec=pltpu.PrefetchScalarGridSpec(
            num_scalar_prefetch=0,
            grid=grid,
            in_specs=[
                pl.BlockSpec((tm, d_model_p), lambda i, k: (i, 0)),    # x tile
                pl.BlockSpec((d_model_p, tff), lambda i, k: (0, k)),   # W1 slice
                pl.BlockSpec((1, tff), lambda i, k: (0, k)),           # b1 slice
                pl.BlockSpec((tff, d_model_p), lambda i, k: (k, 0)),   # W2 slice
                pl.BlockSpec((1, d_model_p), lambda i, k: (0, 0)),     # b2
            ],
            out_specs=pl.BlockSpec((tm, d_model_p), lambda i, k: (i, 0)),
            scratch_shapes=scratch,
        ),
        compiler_params=pltpu.CompilerParams(
            dimension_semantics=("parallel", "arbitrary"),
            vmem_limit_bytes=vmem_limit,
        ),
    )(xm, w1, b1, w2, b2)

    return out[:M, :d_model].reshape(*lead, d_model)


def reference(x, w1, b1, w2, b2):
    h = jnp.maximum(jnp.dot(x, w1) + b1.reshape(-1), 0.0)
    return jnp.dot(h, w2) + b2.reshape(-1)


if __name__ == "__main__":
    # Small shapes implied by the module: (batch, seq, d_model), d_ff = 2*d_model
    batch, seq, d_model, d_ff = 2, 8, 32, 64

    key = jax.random.PRNGKey(0)
    kx, kw1, kb1, kw2, kb2 = jax.random.split(key, 5)

    x = jax.random.normal(kx, (batch, seq, d_model), dtype=jnp.float32)
    # nn.Linear params stored transposed: (d_in, d_out)
    w1 = jax.random.normal(kw1, (d_model, d_ff), dtype=jnp.float32) * 0.05
    b1 = jax.random.normal(kb1, (d_ff,), dtype=jnp.float32) * 0.05
    w2 = jax.random.normal(kw2, (d_ff, d_model), dtype=jnp.float32) * 0.05
    b2 = jax.random.normal(kb2, (d_model,), dtype=jnp.float32) * 0.05

    # --- production path: bf16 weights/activations (pre-cast once), f32 acc ---
    xb = x.astype(jnp.bfloat16)
    w1b, b1b = w1.astype(jnp.bfloat16), b1.astype(jnp.bfloat16)
    w2b, b2b = w2.astype(jnp.bfloat16), b2.astype(jnp.bfloat16)

    y = feedforward(xb, w1b, b1b, w2b, b2b)
    jax.block_until_ready(y)
    y_ref = reference(x, w1, b1, w2, b2)
    assert y.shape == (batch, seq, d_model)
    assert jnp.allclose(y.astype(jnp.float32), y_ref, atol=3e-2, rtol=3e-2), \
        "bf16 kernel mismatch vs f32 reference"

    # --- f32 check, forcing a multi-step d_ff reduction + ragged/odd shapes
    #     to exercise the accumulator path and padding logic ---
    x2 = jax.random.normal(kx, (3, 7, 48), dtype=jnp.float32)
    w1f = jax.random.normal(kw1, (48, 160), dtype=jnp.float32) * 0.05
    b1f = jax.random.normal(kb1, (160,), dtype=jnp.float32) * 0.05
    w2f = jax.random.normal(kw2, (160, 48), dtype=jnp.float32) * 0.05
    b2f = jax.random.normal(kb2, (48,), dtype=jnp.float32) * 0.05

    y2 = feedforward(x2, w1f, b1f, w2f, b2f, tile_m=16, tile_ff=128)
    jax.block_until_ready(y2)
    y2_ref = reference(x2, w1f, b1f, w2f, b2f)
    assert y2.shape == (3, 7, 48)
    assert jnp.allclose(y2, y2_ref, atol=2e-3, rtol=2e-3), \
        "f32 multi-k kernel mismatch vs reference"

    print("KERNEL_OK")
</pallas_src>

<mosaic_0001>
module attributes {stable_mosaic.version = 11 : i64} {
  func.func @kernel(%arg0: i32, %arg1: i32, %arg2: memref<16x128xbf16, #tpu.memory_space<vmem>>, %arg3: memref<128x128xbf16, #tpu.memory_space<vmem>>, %arg4: memref<1x128xbf16, #tpu.memory_space<vmem>>, %arg5: memref<128x128xbf16, #tpu.memory_space<vmem>>, %arg6: memref<1x128xbf16, #tpu.memory_space<vmem>>, %arg7: memref<16x128xbf16, #tpu.memory_space<vmem>>) attributes {dimension_semantics = [#tpu.dimension_semantics<parallel>, #tpu.dimension_semantics<arbitrary>], iteration_bounds = array<i64: 1, 1>, scalar_prefetch = 0 : i64, scratch_operands = 0 : i64, tpu.core_type = #tpu.core_type<tc>, window_params = [{transform_indices = @transform_0, window_bounds = array<i64: 16, 128>}, {transform_indices = @transform_1, window_bounds = array<i64: 128, 128>}, {transform_indices = @transform_2, window_bounds = array<i64: 1, 128>}, {transform_indices = @transform_3, window_bounds = array<i64: 128, 128>}, {pipeline_mode = #tpu.pipeline_mode<synchronous>, transform_indices = @transform_4, window_bounds = array<i64: 1, 128>}, {transform_indices = @transform_5, window_bounds = array<i64: 16, 128>}]} {
    %c0 = arith.constant 0 : index
    %c0_0 = arith.constant 0 : index
    %0 = vector.load %arg2[%c0, %c0_0] : memref<16x128xbf16, #tpu.memory_space<vmem>>, vector<16x128xbf16>
    %c0_1 = arith.constant 0 : index
    %c0_2 = arith.constant 0 : index
    %1 = vector.load %arg3[%c0_1, %c0_2] : memref<128x128xbf16, #tpu.memory_space<vmem>>, vector<128x128xbf16>
    %cst = arith.constant dense<0.000000e+00> : vector<16x128xf32>
    %2 = tpu.matmul %0, %1, %cst {dimension_numbers = #tpu.dot_dimension_numbers<[1], [0], [0], [1], [0, 0, 1, 1], [], []>} : vector<16x128xbf16>, vector<128x128xbf16>, vector<16x128xf32> -> vector<16x128xf32>
    %c0_3 = arith.constant 0 : index
    %c0_4 = arith.constant 0 : index
    %3 = vector.load %arg4[%c0_3, %c0_4] : memref<1x128xbf16, #tpu.memory_space<vmem>>, vector<1x128xbf16>
    %4 = arith.extf %3 : vector<1x128xbf16> to vector<1x128xf32>
    %5 = vector.broadcast %4 : vector<1x128xf32> to vector<16x128xf32>
    %6 = arith.addf %2, %5 : vector<16x128xf32>
    %cst_5 = arith.constant 0.000000e+00 : f32
    %7 = vector.broadcast %cst_5 : f32 to vector<16x128xf32>
    %8 = arith.maximumf %6, %7 : vector<16x128xf32>
    %9 = arith.truncf %8 : vector<16x128xf32> to vector<16x128xbf16>
    %c0_6 = arith.constant 0 : index
    %c0_7 = arith.constant 0 : index
    %10 = vector.load %arg5[%c0_6, %c0_7] : memref<128x128xbf16, #tpu.memory_space<vmem>>, vector<128x128xbf16>
    %cst_8 = arith.constant dense<0.000000e+00> : vector<16x128xf32>
    %11 = tpu.matmul %9, %10, %cst_8 {dimension_numbers = #tpu.dot_dimension_numbers<[1], [0], [0], [1], [0, 0, 1, 1], [], []>} : vector<16x128xbf16>, vector<128x128xbf16>, vector<16x128xf32> -> vector<16x128xf32>
    %c0_9 = arith.constant 0 : index
    %c0_10 = arith.constant 0 : index
    %12 = vector.load %arg6[%c0_9, %c0_10] : memref<1x128xbf16, #tpu.memory_space<vmem>>, vector<1x128xbf16>
    %13 = arith.extf %12 : vector<1x128xbf16> to vector<1x128xf32>
    %14 = vector.broadcast %13 : vector<1x128xf32> to vector<16x128xf32>
    %15 = arith.addf %11, %14 : vector<16x128xf32>
    %16 = arith.truncf %15 : vector<16x128xf32> to vector<16x128xbf16>
    %c0_11 = arith.constant 0 : index
    %c0_12 = arith.constant 0 : index
    %17 = vector.load %arg7[%c0_11, %c0_12] : memref<16x128xbf16, #tpu.memory_space<vmem>>, vector<16x128xbf16>
    tpu.vector_store %arg7[%c0_11, %c0_12], %16 {strides = array<i32>} : memref<16x128xbf16, #tpu.memory_space<vmem>>, vector<16x128xbf16>,
    return
  }
  func.func @transform_0(%arg0: i32, %arg1: i32) -> (i32, i32) {
    %c0_i32 = arith.constant 0 : i32
    %c0_i32_0 = arith.constant 0 : i32
    return %arg0, %c0_i32 : i32, i32
  }
  func.func @transform_1(%arg0: i32, %arg1: i32) -> (i32, i32) {
    %c0_i32 = arith.constant 0 : i32
    %c0_i32_0 = arith.constant 0 : i32
    return %c0_i32, %arg1 : i32, i32
  }
  func.func @transform_2(%arg0: i32, %arg1: i32) -> (i32, i32) {
    %c0_i32 = arith.constant 0 : i32
    %c0_i32_0 = arith.constant 0 : i32
    return %c0_i32, %arg1 : i32, i32
  }
  func.func @transform_3(%arg0: i32, %arg1: i32) -> (i32, i32) {
    %c0_i32 = arith.constant 0 : i32
    %c0_i32_0 = arith.constant 0 : i32
    return %arg1, %c0_i32 : i32, i32
  }
  func.func @transform_4(%arg0: i32, %arg1: i32) -> (i32, i32) {
    %c0_i32 = arith.constant 0 : i32
    %c0_i32_0 = arith.constant 0 : i32
    %c0_i32_1 = arith.constant 0 : i32
    return %c0_i32, %c0_i32_0 : i32, i32
  }
  func.func @transform_5(%arg0: i32, %arg1: i32) -> (i32, i32) {
    %c0_i32 = arith.constant 0 : i32
    %c0_i32_0 = arith.constant 0 : i32
    return %arg0, %c0_i32 : i32, i32
  }
}

</mosaic_0001>

<llo_original>
// kernel: tpu_custom_call.1
$region0: #{tpu_custom_call.1}
  #allocation0 [shape = 'u32[]', space=smem, size = 0x4, offset = 0x4, fixed_abs, tag = 'smem constant byte address 0x4 - core index']
  #allocation1 [shape = 'u32[144,128]{1,0:T(1,128)}', space=vmem, size = 0x12000, scoped, tag = 'internal scratch']
  %s0 = inlined_call_operand.hbm [shape: bf16[16,128], index: 0, kind: input, shape index: {}]
  %s1 = inlined_call_operand.hbm [shape: bf16[128,128], index: 1, kind: input, shape index: {}]
  %s2 = inlined_call_operand.hbm [shape: bf16[1,128], index: 2, kind: input, shape index: {}]
  %s3 = inlined_call_operand.hbm [shape: bf16[128,128], index: 3, kind: input, shape index: {}]
  %s4 = inlined_call_operand.hbm [shape: bf16[1,128], index: 4, kind: input, shape index: {}]
  %s5 = inlined_call_operand.hbm [shape: bf16[16,128], index: 5, kind: output, shape index: {}]
  %s6 = sld [smem:[#allocation0]]
  $region50: #{tpu_custom_call.1} parent=0
    _
  %s8 = ssub.s32 1, %s6
  %s9 = scalar_select 0, %s8, %s6
  $region1: #{tpu_custom_call.1} parent=0
    #allocation2 [shape = 'u8[4096]{0}', space=vmem, size = 0x1000, scoped, tag = 'input window, operand 0, single buffered']
    #allocation3 [shape = 's32[1]{0}', space=sflag, size = 0x4, scoped, tag = 'scoped memory for tpu_custom_call.1']
    #allocation4 [shape = 's32[1]{0}', space=sflag, size = 0x4, scoped, tag = 'scoped memory for tpu_custom_call.1']
    #allocation5 [shape = 'u8[32768]{0}', space=vmem, size = 0x8000, scoped, tag = 'input window, operand 1, single buffered']
    #allocation6 [shape = 's32[1]{0}', space=sflag, size = 0x4, scoped, tag = 'scoped memory for tpu_custom_call.1']
    #allocation7 [shape = 'u8[512]{0}', space=vmem, size = 0x400, scoped, tag = 'input window, operand 2, single buffered']
    #allocation8 [shape = 'u8[32768]{0}', space=vmem, size = 0x8000, scoped, tag = 'input window, operand 3, single buffered']
    #allocation9 [shape = 's32[1]{0}', space=sflag, size = 0x4, scoped, tag = 'scoped memory for tpu_custom_call.1']
    #allocation10 [shape = 'u8[512]{0}', space=vmem, size = 0x400, scoped, tag = 'input window, operand 4, single buffered']
    #allocation11 [shape = 'u8[4096]{0}', space=vmem, size = 0x1000, scoped, tag = 'output window, operand 0, single buffered']
    %10 = vsyncpa [#allocation3], 0
    %11 = vsyncpa [#allocation6], 0
    %12 = vsyncpa [#allocation9], 0
    %13 = vsyncpa [#allocation4], 0
    // Predicated region
    $region2: #{tpu_custom_call.1} parent=1 // pred_check
      _
    $region3: #{tpu_custom_call.1} parent=1 // pred_check_branch
      %15 = sbr.rel (0) target = $region5
    $region4: #{tpu_custom_call.1} parent=1 // pred_region
      %s17 = ssub.s32 128, 128
      %18 = vsyncadd [#allocation3], %s17
      %s19 = sshll.u32 [#allocation2], 4
      %s20 = int_to_ptr.vmem [resolvable:$true] %s19
      %25 = dma.hbm_to_vmem [thread:$0]  %s0, 128, %s20, [#allocation3], 64, 64, 4
    $region5: #{tpu_custom_call.1} parent=1 // pred_fallthru
      _
    // Predicated region
    $region6: #{tpu_custom_call.1} parent=1 // pred_check
      _
    $region7: #{tpu_custom_call.1} parent=1 // pred_check_branch
      %27 = sbr.rel (0) target = $region9
    $region8: #{tpu_custom_call.1} parent=1 // pred_region
      %s29 = ssub.s32 1024, 1024
      %30 = vsyncadd [#allocation6], %s29
      %s31 = sshll.u32 [#allocation5], 4
      %s32 = int_to_ptr.vmem [resolvable:$true] %s31
      %37 = dma.hbm_to_vmem [thread:$0]  %s1, 1024, %s32, [#allocation6], 64, 64, 4
    $region9: #{tpu_custom_call.1} parent=1 // pred_fallthru
      _
    // Predicated region
    $region10: #{tpu_custom_call.1} parent=1 // pred_check
      _
    $region11: #{tpu_custom_call.1} parent=1 // pred_check_branch
      %39 = sbr.rel (0) target = $region13
    $region12: #{tpu_custom_call.1} parent=1 // pred_region
      %s41 = ssub.s32 16, 16
      %42 = vsyncadd [#allocation6], %s41
      %s44 = sshll.u32 [#allocation7], 4
      %s45 = int_to_ptr.vmem [resolvable:$true] %s44
      %47 = dma.hbm_to_vmem [thread:$0]  %s2, 16, %s45, [#allocation6]
    $region13: #{tpu_custom_call.1} parent=1 // pred_fallthru
      _
    // Predicated region
    $region14: #{tpu_custom_call.1} parent=1 // pred_check
      _
    $region15: #{tpu_custom_call.1} parent=1 // pred_check_branch
      %49 = sbr.rel (0) target = $region17
    $region16: #{tpu_custom_call.1} parent=1 // pred_region
      %s51 = ssub.s32 1024, 1024
      %52 = vsyncadd [#allocation9], %s51
      %s53 = sshll.u32 [#allocation8], 4
      %s54 = int_to_ptr.vmem [resolvable:$true] %s53
      %59 = dma.hbm_to_vmem [thread:$0]  %s3, 1024, %s54, [#allocation9], 64, 64, 4
    $region17: #{tpu_custom_call.1} parent=1 // pred_fallthru
      _
    // Predicated region
    $region18: #{tpu_custom_call.1} parent=1 // pred_check
      _
    $region19: #{tpu_custom_call.1} parent=1 // pred_check_branch
      %61 = sbr.rel (0) target = $region21
    $region20: #{tpu_custom_call.1} parent=1 // pred_region
      %s63 = ssub.s32 16, 16
      %64 = vsyncadd [#allocation9], %s63
      %s66 = sshll.u32 [#allocation10], 4
      %s67 = int_to_ptr.vmem [resolvable:$true] %s66
      %69 = dma.hbm_to_vmem [thread:$0]  %s4, 16, %s67, [#allocation9]
    $region21: #{tpu_custom_call.1} parent=1 // pred_fallthru
      _
    // Predicated region
    $region22: #{tpu_custom_call.1} parent=1 // pred_check
      _
    $region23: #{tpu_custom_call.1} parent=1 // pred_check_branch
      %71 = sbr.rel (0) target = $region25
    $region24: #{tpu_custom_call.1} parent=1 // pred_region
      %72 = dma.done [#allocation3], 128
    $region25: #{tpu_custom_call.1} parent=1 // pred_fallthru
      _
    // Predicated region
    $region26: #{tpu_custom_call.1} parent=1 // pred_check
      _
    $region27: #{tpu_custom_call.1} parent=1 // pred_check_branch
      %74 = sbr.rel (0) target = $region29
    $region28: #{tpu_custom_call.1} parent=1 // pred_region
      %75 = dma.done [#allocation6], 1024
    $region29: #{tpu_custom_call.1} parent=1 // pred_fallthru
      _
    // Predicated region
    $region30: #{tpu_custom_call.1} parent=1 // pred_check
      _
    $region31: #{tpu_custom_call.1} parent=1 // pred_check_branch
      %77 = sbr.rel (0) target = $region33
    $region32: #{tpu_custom_call.1} parent=1 // pred_region
      %78 = dma.done [#allocation6], 16
    $region33: #{tpu_custom_call.1} parent=1 // pred_fallthru
      _
    // Predicated region
    $region34: #{tpu_custom_call.1} parent=1 // pred_check
      _
    $region35: #{tpu_custom_call.1} parent=1 // pred_check_branch
      %80 = sbr.rel (0) target = $region37
    $region36: #{tpu_custom_call.1} parent=1 // pred_region
      %81 = dma.done [#allocation9], 1024
    $region37: #{tpu_custom_call.1} parent=1 // pred_fallthru
      _
    // Predicated region
    $region38: #{tpu_custom_call.1} parent=1 // pred_check
      _
    $region39: #{tpu_custom_call.1} parent=1 // pred_check_branch
      %83 = sbr.rel (0) target = $region41
    $region40: #{tpu_custom_call.1} parent=1 // pred_region
      %84 = dma.done [#allocation9], 16
    $region41: #{tpu_custom_call.1} parent=1 // pred_fallthru
      _
    %v86 = vld [vmem:[#allocation2] sm:$0xf]
    %v87 = vld [vmem:[#allocation2 + $0x4] sm:$0xf]
    %v88 = vld [vmem:[#allocation5] sm:$0xf]
    %v89 = vld [vmem:[#allocation5 + $0x4] sm:$0xf]
    %v90 = vld [vmem:[#allocation5 + $0x8] sm:$0xf]
    %v91 = vld [vmem:[#allocation5 + $0xc] sm:$0xf]
    %v92 = vld [vmem:[#allocation5 + $0x10] sm:$0xf]
    %v93 = vld [vmem:[#allocation5 + $0x14] sm:$0xf]
    %v94 = vld [vmem:[#allocation5 + $0x18] sm:$0xf]
    %v95 = vld [vmem:[#allocation5 + $0x1c] sm:$0xf]
    %v96 = vld [vmem:[#allocation5 + $0x20] sm:$0xf]
    %v97 = vld [vmem:[#allocation5 + $0x24] sm:$0xf]
    %v98 = vld [vmem:[#allocation5 + $0x28] sm:$0xf]
    %v99 = vld [vmem:[#allocation5 + $0x2c] sm:$0xf]
    %v100 = vld [vmem:[#allocation5 + $0x30] sm:$0xf]
    %v101 = vld [vmem:[#allocation5 + $0x34] sm:$0xf]
    %v102 = vld [vmem:[#allocation5 + $0x38] sm:$0xf]
    %v103 = vld [vmem:[#allocation5 + $0x3c] sm:$0xf]
    %v104 = vld [vmem:[#allocation7] sm:$0x1]
    %v105 = vunpack.c.l.bf16 %v104
    %v106 = vlaneseq
    %v107 = vshrl.u32 %v106, 7
    %v108 = vsub.s32 0, %v107
    %v109 = vrot.slane %v105, %v108
    %v112 = vunpack.c.l.b16 %v86
    %v113 = vunpack.c.l.b16 %v87
    %v114 = vpack.c.b16 %v113, %v112
    %v132 = vunpack.c.l.b16 %v88
    %v133 = vunpack.c.l.b16 %v89
    %v134 = vunpack.c.l.b16 %v90
    %v135 = vunpack.c.l.b16 %v91
    %v136 = vunpack.c.l.b16 %v92
    %v137 = vunpack.c.l.b16 %v93
    %v138 = vunpack.c.l.b16 %v94
    %v139 = vunpack.c.l.b16 %v95
    %v140 = vunpack.c.l.b16 %v96
    %v141 = vunpack.c.l.b16 %v97
    %v142 = vunpack.c.l.b16 %v98
    %v143 = vunpack.c.l.b16 %v99
    %v144 = vunpack.c.l.b16 %v100
    %v145 = vunpack.c.l.b16 %v101
    %v146 = vunpack.c.l.b16 %v102
    %v147 = vunpack.c.l.b16 %v103
    %v148 = vpack.c.b16 %v133, %v132
    %v149 = vpack.c.b16 %v135, %v134
    %v150 = vpack.c.b16 %v137, %v136
    %v151 = vpack.c.b16 %v139, %v138
    %v152 = vpack.c.b16 %v141, %v140
    %v153 = vpack.c.b16 %v143, %v142
    %v154 = vpack.c.b16 %v145, %v144
    %v155 = vpack.c.b16 %v147, %v146
    %164 = vmatprep.subr.bf16.mxu0 0
    %165 = vmatpush1.bf16.msra.mxu0 %v148
    %166 = vmatprep.subr.bf16.mxu0 0
    %167 = vmatpush1.bf16.msra.mxu0 %v149
    %168 = vmatprep.subr.bf16.mxu0 0
    %169 = vmatpush1.bf16.msra.mxu0 %v150
    %170 = vmatprep.subr.bf16.mxu0 0
    %171 = vmatpush1.bf16.msra.mxu0 %v151
    %172 = vmatprep.subr.bf16.mxu0 0
    %173 = vmatpush1.bf16.msra.mxu0 %v152
    %174 = vmatprep.subr.bf16.mxu0 0
    %175 = vmatpush1.bf16.msra.mxu0 %v153
    %176 = vmatprep.subr.bf16.mxu0 0
    %177 = vmatpush1.bf16.msra.mxu0 %v154
    %178 = vmatprep.subr.bf16.mxu0 0
    %179 = vmatpush1.bf16.msra.mxu0 %v155
    %180 = vmatprep.subr.bf16.mxu0 0
    %181 = vmatpush1.bf16.msra.mxu0 0
    %182 = vmatprep.subr.bf16.mxu0 0
    %183 = vmatpush1.bf16.msra.mxu0 0
    %184 = vmatprep.subr.bf16.mxu0 0
    %185 = vmatpush1.bf16.msra.mxu0 0
    %186 = vmatprep.subr.bf16.mxu0 0
    %187 = vmatpush1.bf16.msra.mxu0 0
    %188 = vmatprep.subr.bf16.mxu0 0
    %189 = vmatpush1.bf16.msra.mxu0 0
    %190 = vmatprep.subr.bf16.mxu0 0
    %191 = vmatpush1.bf16.msra.mxu0 0
    %192 = vmatprep.subr.bf16.mxu0 0
    %193 = vmatpush1.bf16.msra.mxu0 0
    %194 = vmatprep.subr.bf16.mxu0 0
    %195 = vmatpush1.bf16.msra.mxu0 0
    %196 = vmatprep.mubr.bf16.mxu0 0
    %197 = vmatmul.mubr.bf16.gmra.mrb[0].mxu0 %v114
    %v198 = vpop.f32.mrb[0].mxu0
    %v199 = vadd.f32 %v109, %v198
    %v200 = vpop.f32.mrb[0].mxu0
    %v201 = vpop.f32.mrb[0].mxu0
    %v202 = vadd.f32 %v109, %v201
    %v203 = vpop.f32.mrb[0].mxu0
    %204 = vdwg.mxu0
    %v205 = vmax.f32 %v199, 0.0
    %v206 = vmax.f32 %v202, 0.0
    %v207 = vpack.c.bf16 %v206, %v205
    %v208 = vld [vmem:[#allocation8] sm:$0xf]
    %v209 = vld [vmem:[#allocation8 + $0x4] sm:$0xf]
    %v210 = vld [vmem:[#allocation8 + $0x8] sm:$0xf]
    %v211 = vld [vmem:[#allocation8 + $0xc] sm:$0xf]
    %v212 = vld [vmem:[#allocation8 + $0x10] sm:$0xf]
    %v213 = vld [vmem:[#allocation8 + $0x14] sm:$0xf]
    %v214 = vld [vmem:[#allocation8 + $0x18] sm:$0xf]
    %v215 = vld [vmem:[#allocation8 + $0x1c] sm:$0xf]
    %v216 = vld [vmem:[#allocation8 + $0x20] sm:$0xf]
    %v217 = vld [vmem:[#allocation8 + $0x24] sm:$0xf]
    %v218 = vld [vmem:[#allocation8 + $0x28] sm:$0xf]
    %v219 = vld [vmem:[#allocation8 + $0x2c] sm:$0xf]
    %v220 = vld [vmem:[#allocation8 + $0x30] sm:$0xf]
    %v221 = vld [vmem:[#allocation8 + $0x34] sm:$0xf]
    %v222 = vld [vmem:[#allocation8 + $0x38] sm:$0xf]
    %v223 = vld [vmem:[#allocation8 + $0x3c] sm:$0xf]
    %v224 = vld [vmem:[#allocation10] sm:$0x1]
    %v225 = vunpack.c.l.bf16 %v224
    %v226 = vlaneseq
    %v227 = vshrl.u32 %v226, 7
    %v228 = vsub.s32 0, %v227
    %v229 = vrot.slane %v225, %v228
    %v246 = vunpack.c.l.b16 %v208
    %v247 = vunpack.c.l.b16 %v209
    %v248 = vunpack.c.l.b16 %v210
    %v249 = vunpack.c.l.b16 %v211
    %v250 = vunpack.c.l.b16 %v212
    %v251 = vunpack.c.l.b16 %v213
    %v252 = vunpack.c.l.b16 %v214
    %v253 = vunpack.c.l.b16 %v215
    %v254 = vunpack.c.l.b16 %v216
    %v255 = vunpack.c.l.b16 %v217
    %v256 = vunpack.c.l.b16 %v218
    %v257 = vunpack.c.l.b16 %v219
    %v258 = vunpack.c.l.b16 %v220
    %v259 = vunpack.c.l.b16 %v221
    %v260 = vunpack.c.l.b16 %v222
    %v261 = vunpack.c.l.b16 %v223
    %v262 = vpack.c.b16 %v247, %v246
    %v263 = vpack.c.b16 %v249, %v248
    %v264 = vpack.c.b16 %v251, %v250
    %v265 = vpack.c.b16 %v253, %v252
    %v266 = vpack.c.b16 %v255, %v254
    %v267 = vpack.c.b16 %v257, %v256
    %v268 = vpack.c.b16 %v259, %v258
    %v269 = vpack.c.b16 %v261, %v260
    %278 = vmatprep.subr.bf16.mxu0 0
    %279 = vmatpush1.bf16.msra.mxu0 %v262
    %280 = vmatprep.subr.bf16.mxu0 0
    %281 = vmatpush1.bf16.msra.mxu0 %v263
    %282 = vmatprep.subr.bf16.mxu0 0
    %283 = vmatpush1.bf16.msra.mxu0 %v264
    %284 = vmatprep.subr.bf16.mxu0 0
    %285 = vmatpush1.bf16.msra.mxu0 %v265
    %286 = vmatprep.subr.bf16.mxu0 0
    %287 = vmatpush1.bf16.msra.mxu0 %v266
    %288 = vmatprep.subr.bf16.mxu0 0
    %289 = vmatpush1.bf16.msra.mxu0 %v267
    %290 = vmatprep.subr.bf16.mxu0 0
    %291 = vmatpush1.bf16.msra.mxu0 %v268
    %292 = vmatprep.subr.bf16.mxu0 0
    %293 = vmatpush1.bf16.msra.mxu0 %v269
    %294 = vmatprep.subr.bf16.mxu0 0
    %295 = vmatpush1.bf16.msra.mxu0 0
    %296 = vmatprep.subr.bf16.mxu0 0
    %297 = vmatpush1.bf16.msra.mxu0 0
    %298 = vmatprep.subr.bf16.mxu0 0
    %299 = vmatpush1.bf16.msra.mxu0 0
    %300 = vmatprep.subr.bf16.mxu0 0
    %301 = vmatpush1.bf16.msra.mxu0 0
    %302 = vmatprep.subr.bf16.mxu0 0
    %303 = vmatpush1.bf16.msra.mxu0 0
    %304 = vmatprep.subr.bf16.mxu0 0
    %305 = vmatpush1.bf16.msra.mxu0 0
    %306 = vmatprep.subr.bf16.mxu0 0
    %307 = vmatpush1.bf16.msra.mxu0 0
    %308 = vmatprep.subr.bf16.mxu0 0
    %309 = vmatpush1.bf16.msra.mxu0 0
    %310 = vmatprep.mubr.bf16.mxu0 0
    %311 = vmatmul.mubr.bf16.gmra.mrb[0].mxu0 %v207
    %v312 = vpop.f32.mrb[0].mxu0
    %v313 = vadd.f32 %v229, %v312
    %v314 = vpop.f32.mrb[0].mxu0
    %v315 = vpop.f32.mrb[0].mxu0
    %v316 = vadd.f32 %v229, %v315
    %v317 = vpop.f32.mrb[0].mxu0
    %318 = vdwg.mxu0
    %v319 = vpack.c.bf16 %v316, %v313
    %v321 = vunpack.c.l.b16 %v319
    %v322 = vunpack.c.h.b16 %v319
    %v323 = vpack.c.b16 %v321, %v321
    %v324 = vpack.c.b16 %v322, %v322
    %327 = vst [vmem:[#allocation11] sm:$0xf] %v323
    %328 = vst [vmem:[#allocation11 + $0x4] sm:$0xf] %v324
    // Predicated region
    $region42: #{tpu_custom_call.1} parent=1 // pred_check
      _
    $region43: #{tpu_custom_call.1} parent=1 // pred_check_branch
      %330 = sbr.rel (0) target = $region45
    $region44: #{tpu_custom_call.1} parent=1 // pred_region
      %s332 = ssub.s32 128, 128
      %333 = vsyncadd [#allocation4], %s332
      %s334 = sshll.u32 [#allocation11], 4
      %s335 = int_to_ptr.vmem [resolvable:$true] %s334
      %340 = dma.vmem_to_hbm [thread:$0]  %s335, 128, %s5, [#allocation4], 64, 64, 4
    $region45: #{tpu_custom_call.1} parent=1 // pred_fallthru
      _
    // Predicated region
    $region46: #{tpu_custom_call.1} parent=1 // pred_check
      _
    $region47: #{tpu_custom_call.1} parent=1 // pred_check_branch
      %342 = sbr.rel (0) target = $region49
    $region48: #{tpu_custom_call.1} parent=1 // pred_region
      %343 = dma.done [#allocation4], 128
    $region49: #{tpu_custom_call.1} parent=1 // pred_fallthru
      _
    %344 = vsyncpa [#allocation3], 1
    %345 = vsyncpa [#allocation6], 1
    %346 = vsyncpa [#allocation9], 1
    %347 = vsyncpa [#allocation4], 1

</llo_original>
